<compile_context>
chip_gen: v7x
topology: tpu7x:2x2x1
jax: 0.10.0
libtpu: 0.0.40
codegen_flags: <defaults>
</compile_context>

<pallas_src>
import functools

import jax
import jax.numpy as jnp
from jax import lax
from jax.experimental import pallas as pl
from jax.experimental.pallas import tpu as pltpu

HIDDEN_SIZE = 32
RNN_HIDDEN = HIDDEN_SIZE // 2

SELU_ALPHA = 1.6732632423543772848170429916717
SELU_SCALE = 1.0507009873554804934193349852946


def _selu(x):
    return SELU_SCALE * jnp.where(x > 0, x, SELU_ALPHA * (jnp.exp(x) - 1.0))


def _round_up(x, m):
    return ((x + m - 1) // m) * m


def pointnet_kernel(c_ref, k_ref, ksum_ref, wd_ref, weT_ref, out_ref, *,
                    nsub, tj_sub):
    """One (TB, TI, nsub*tj_sub) output block.

    Inputs per block:
      wd_ref  : (TB, TI, H2)        i on sublanes, h on lanes       (i-side)
      weT_ref : (TB, H2, nsub*tj_sub) h on sublanes, j on lanes     (j-side)
    SMEM:
      c_ref (H2,) = SCALE*V ; k_ref (H2,) = SCALE*ALPHA*V ; ksum_ref (1,) = sum(k)

    Per h (exact SELU, V folded in):
      x   = wd[:, h] + we[h, :]                 (one lane + one sublane bcast)
      acc += where(x > 0, c[h]*x + k[h], k[h]*exp(x))     ; acc starts at -sum(k)
    """
    TB, TI, H2 = wd_ref.shape
    neg_ksum = -ksum_ref[0]

    def batch_body(b, carry):
        wd_b = wd_ref[b]            # (TI, H2)
        we_b = weT_ref[b]           # (H2, nsub*tj_sub)
        for js in range(nsub):
            we_s = we_b[:, js * tj_sub:(js + 1) * tj_sub]   # (H2, tj_sub)
            # -K init saves the final subtraction pass (review: minor item).
            acc = jnp.full((TI, tj_sub), neg_ksum, dtype=jnp.float32)
            for h in range(H2):                              # H2 == 16, unrolled
                x = wd_b[:, h:h + 1] + we_s[h:h + 1, :]      # (TI, tj_sub)
                e = jnp.exp(x)                               # EUP slot (nearly free)
                acc = acc + jnp.where(x > 0.0,
                                      c_ref[h] * x + k_ref[h],   # positive branch
                                      k_ref[h] * e)              # negative branch
            out_ref[b, :, js * tj_sub:(js + 1) * tj_sub] = acc.astype(out_ref.dtype)
        return carry

    if TB == 1:
        batch_body(0, 0)            # static index, tightest codegen
    else:
        lax.fori_loop(0, TB, batch_body, 0)


def pointnet_pallas(en, de, w1, w2, v):
    """en: (B,S,HIDDEN), de: (B,S,H2); w1: (H2,HIDDEN), w2: (H2,H2), v: (H2,).

    Returns att of shape (B, S, S), matching the PyTorch module forward.
    """
    en = jnp.asarray(en, jnp.float32)
    de = jnp.asarray(de, jnp.float32)
    w1 = jnp.asarray(w1, jnp.float32)
    w2 = jnp.asarray(w2, jnp.float32)
    v = jnp.asarray(v, jnp.float32).reshape(-1)

    B, S, _H = en.shape
    H2 = w1.shape[0]

    # ---- Projections: one fat XLA GEMM each; j-side produced directly in the
    # transposed (B, H2, S) layout (transpose fused into the einsum). ---------
    wd = jnp.einsum("bsh,oh->bso", de, w2)                  # (B, S, H2)  i-side
    weT = jnp.einsum("bsh,oh->bos", en, w1)                 # (B, H2, S)  j-side

    # ---- Tiny SELU/V scalar tables for SMEM --------------------------------
    c = (SELU_SCALE * v).astype(jnp.float32)                # (H2,)
    k = (SELU_SCALE * SELU_ALPHA * v).astype(jnp.float32)   # (H2,)
    ksum = jnp.sum(k).reshape((1,)).astype(jnp.float32)

    # ---- Tile selection -----------------------------------------------------
    if S >= 128:
        # Tiled path: 128-row i tiles, lane-dense 128-wide j sub-tiles; pack up
        # to 8 sub-tiles per grid step to amortize the ~0.35us step overhead.
        TI = 128
        s_i_pad = _round_up(S, TI)
        s_j_pad = _round_up(S, 128)
        nj = s_j_pad // 128
        nsub = 1
        for cand in (8, 4, 2):
            if nj % cand == 0:
                nsub = cand
                break
        tj_sub = 128
        tj_blk = tj_sub * nsub
        TB = 1
        b_pad = B
    else:
        # Small-S path: whole (S_i, S_j) per batch, graded batch block TB with
        # an in-kernel loop (per-batch accumulator stays register resident).
        s_i_pad = _round_up(S, 8)
        s_j_pad = S                       # full-dim lane block (no j padding)
        TI = s_i_pad
        tj_sub = S
        nsub = 1
        tj_blk = S
        tb_target = max(1, 512 // s_i_pad)          # ~amortize step overhead
        if B >= 2:
            TB = max(1, min(tb_target, (B + 1) // 2))   # keep >=2 steps (v7x)
        else:
            TB = 1
        TB = min(TB, B)
        b_pad = _round_up(B, TB)

    grid = (b_pad // TB, s_i_pad // TI, s_j_pad // tj_blk)

    # ---- Cheap O(B*S*H2) zero padding for non-divisible B / S ---------------
    # Padded rows give x = 0 -> SELU(0) = 0: finite, and sliced off below.
    if (b_pad, s_i_pad) != (B, S):
        wd = jnp.pad(wd, ((0, b_pad - B), (0, s_i_pad - S), (0, 0)))
    if (b_pad, s_j_pad) != (B, S):
        weT = jnp.pad(weT, ((0, b_pad - B), (0, 0), (0, s_j_pad - S)))

    smem = pl.BlockSpec(memory_space=pltpu.MemorySpace.SMEM)
    wd_spec = pl.BlockSpec((TB, TI, H2), lambda b, i, j: (b, i, 0))
    we_spec = pl.BlockSpec((TB, H2, tj_blk), lambda b, i, j: (b, 0, j))
    out_spec = pl.BlockSpec((TB, TI, tj_blk), lambda b, i, j: (b, i, j))

    out = pl.pallas_call(
        functools.partial(pointnet_kernel, nsub=nsub, tj_sub=tj_sub),
        out_shape=jax.ShapeDtypeStruct((b_pad, s_i_pad, s_j_pad), jnp.float32),
        grid_spec=pltpu.PrefetchScalarGridSpec(
            num_scalar_prefetch=0,
            grid=grid,
            in_specs=[smem, smem, smem, wd_spec, we_spec],
            out_specs=out_spec,
        ),
        compiler_params=pltpu.CompilerParams(
            # Every tile is independent -> all axes "parallel" (lets v7x shard
            # across its two TensorCores; harmless on v5e/v6e).
            dimension_semantics=("parallel", "parallel", "parallel"),
            vmem_limit_bytes=32 * 1024 * 1024,
        ),
    )(c, k, ksum, wd, weT)

    if (b_pad, s_i_pad, s_j_pad) != (B, S, S):
        out = out[:B, :S, :S]
    return out


def pointnet_ref(en, de, w1, w2, v):
    """Pure-JAX reference matching the PyTorch forward (exact SELU)."""
    we = jnp.einsum("bsh,oh->bso", en, w1)                  # (B, S, H2)
    wd = jnp.einsum("bsh,oh->bso", de, w2)                  # (B, S, H2)
    observed = wd[:, :, None, :] + we[:, None, :, :]        # (B, S, S, H2)
    return jnp.sum(_selu(observed) * v, axis=-1)            # (B, S, S)


def _run_case(key, B, S):
    k_en, k_de, k_w1, k_w2, k_v = jax.random.split(key, 5)
    en = jax.random.normal(k_en, (B, S, HIDDEN_SIZE), dtype=jnp.float32)
    de = jax.random.normal(k_de, (B, S, RNN_HIDDEN), dtype=jnp.float32)
    # PyTorch Linear weight shapes: (out_features, in_features), no bias.
    w1 = jax.random.normal(k_w1, (RNN_HIDDEN, HIDDEN_SIZE), dtype=jnp.float32) * 0.1
    w2 = jax.random.normal(k_w2, (RNN_HIDDEN, RNN_HIDDEN), dtype=jnp.float32) * 0.1
    v = jax.random.normal(k_v, (RNN_HIDDEN,), dtype=jnp.float32) * 0.1

    out = jax.block_until_ready(jax.jit(pointnet_pallas)(en, de, w1, w2, v))
    ref = pointnet_ref(en, de, w1, w2, v)
    assert out.shape == (B, S, S), (out.shape, (B, S, S))
    max_err = float(jnp.max(jnp.abs(out - ref)))
    assert jnp.allclose(out, ref, atol=1e-5, rtol=1e-5), (
        f"mismatch at B={B}, S={S}, max_err={max_err}")


if __name__ == "__main__":
    key = jax.random.PRNGKey(0)
    # Primary case: shapes implied by the module (batch=2, seq=8, hidden=32).
    _run_case(key, B=2, S=8)
    # Larger-batch small-S path: graded TB, batch padding, >=2 grid steps.
    _run_case(key, B=37, S=8)
    # Irregular small S: sublane (i-axis) padding.
    _run_case(key, B=3, S=13)
    # Tiled large-S path: 128x(128*nsub) blocks, multi-tile grid.
    _run_case(key, B=2, S=256)
    print("KERNEL_OK")
</pallas_src>

<mosaic_0001>
module attributes {stable_mosaic.version = 11 : i64} {
  func.func @pointnet_kernel(%arg0: i32, %arg1: i32, %arg2: i32, %arg3: memref<16xf32, #tpu.memory_space<smem>>, %arg4: memref<16xf32, #tpu.memory_space<smem>>, %arg5: memref<1xf32, #tpu.memory_space<smem>>, %arg6: memref<1x8x16xf32, #tpu.memory_space<vmem>>, %arg7: memref<1x16x8xf32, #tpu.memory_space<vmem>>, %arg8: memref<1x8x8xf32, #tpu.memory_space<vmem>>) attributes {dimension_semantics = [#tpu.dimension_semantics<parallel>, #tpu.dimension_semantics<parallel>, #tpu.dimension_semantics<parallel>], iteration_bounds = array<i64: 2, 1, 1>, scalar_prefetch = 0 : i64, scratch_operands = 0 : i64, tpu.core_type = #tpu.core_type<tc>, window_params = [{transform_indices = @transform_0, window_bounds = array<i64: 16>}, {transform_indices = @transform_1, window_bounds = array<i64: 16>}, {transform_indices = @transform_2, window_bounds = array<i64: 1>}, {transform_indices = @transform_3, window_bounds = array<i64: 1, 8, 16>}, {transform_indices = @transform_4, window_bounds = array<i64: 1, 16, 8>}, {transform_indices = @transform_5, window_bounds = array<i64: 1, 8, 8>}]} {
    %c0 = arith.constant 0 : index
    %0 = memref.load %arg5[%c0] : memref<1xf32, #tpu.memory_space<smem>>
    %cst = arith.constant 0.000000e+00 : f32
    %1 = arith.subf %cst, %0 : f32
    %c0_0 = arith.constant 0 : index
    %c0_1 = arith.constant 0 : index
    %c0_2 = arith.constant 0 : index
    %2 = vector.load %arg6[%c0_0, %c0_1, %c0_2] : memref<1x8x16xf32, #tpu.memory_space<vmem>>, vector<1x8x16xf32>
    %3 = vector.shape_cast %2 : vector<1x8x16xf32> to vector<8x16xf32>
    %c0_3 = arith.constant 0 : index
    %c0_4 = arith.constant 0 : index
    %c0_5 = arith.constant 0 : index
    %4 = vector.load %arg7[%c0_3, %c0_4, %c0_5] : memref<1x16x8xf32, #tpu.memory_space<vmem>>, vector<1x16x8xf32>
    %5 = vector.shape_cast %4 : vector<1x16x8xf32> to vector<16x8xf32>
    %6 = vector.broadcast %1 : f32 to vector<8x8xf32>
    %7 = vector.extract_strided_slice %3 {offsets = [0, 0], sizes = [8, 1], strides = [1, 1]} : vector<8x16xf32> to vector<8x1xf32>
    %8 = vector.extract_strided_slice %5 {offsets = [0, 0], sizes = [1, 8], strides = [1, 1]} : vector<16x8xf32> to vector<1x8xf32>
    %9 = vector.broadcast %7 : vector<8x1xf32> to vector<8x8xf32>
    %10 = vector.broadcast %8 : vector<1x8xf32> to vector<8x8xf32>
    %11 = arith.addf %9, %10 : vector<8x8xf32>
    %12 = math.exp %11 : vector<8x8xf32>
    %cst_6 = arith.constant 0.000000e+00 : f32
    %13 = vector.broadcast %cst_6 : f32 to vector<8x8xf32>
    %14 = arith.cmpf ogt, %11, %13 : vector<8x8xf32>
    %c0_7 = arith.constant 0 : index
    %15 = memref.load %arg3[%c0_7] : memref<16xf32, #tpu.memory_space<smem>>
    %16 = vector.broadcast %15 : f32 to vector<8x8xf32>
    %17 = arith.mulf %16, %11 : vector<8x8xf32>
    %c0_8 = arith.constant 0 : index
    %18 = memref.load %arg4[%c0_8] : memref<16xf32, #tpu.memory_space<smem>>
    %19 = vector.broadcast %18 : f32 to vector<8x8xf32>
    %20 = arith.addf %17, %19 : vector<8x8xf32>
    %c0_9 = arith.constant 0 : index
    %21 = memref.load %arg4[%c0_9] : memref<16xf32, #tpu.memory_space<smem>>
    %22 = vector.broadcast %21 : f32 to vector<8x8xf32>
    %23 = arith.mulf %22, %12 : vector<8x8xf32>
    %24 = arith.select %14, %20, %23 : vector<8x8xi1>, vector<8x8xf32>
    %25 = arith.addf %6, %24 : vector<8x8xf32>
    %26 = vector.extract_strided_slice %3 {offsets = [0, 1], sizes = [8, 1], strides = [1, 1]} : vector<8x16xf32> to vector<8x1xf32>
    %27 = vector.extract_strided_slice %5 {offsets = [1, 0], sizes = [1, 8], strides = [1, 1]} : vector<16x8xf32> to vector<1x8xf32>
    %28 = vector.broadcast %26 : vector<8x1xf32> to vector<8x8xf32>
    %29 = vector.broadcast %27 : vector<1x8xf32> to vector<8x8xf32>
    %30 = arith.addf %28, %29 : vector<8x8xf32>
    %31 = math.exp %30 : vector<8x8xf32>
    %cst_10 = arith.constant 0.000000e+00 : f32
    %32 = vector.broadcast %cst_10 : f32 to vector<8x8xf32>
    %33 = arith.cmpf ogt, %30, %32 : vector<8x8xf32>
    %c1 = arith.constant 1 : index
    %34 = memref.load %arg3[%c1] : memref<16xf32, #tpu.memory_space<smem>>
    %35 = vector.broadcast %34 : f32 to vector<8x8xf32>
    %36 = arith.mulf %35, %30 : vector<8x8xf32>
    %c1_11 = arith.constant 1 : index
    %37 = memref.load %arg4[%c1_11] : memref<16xf32, #tpu.memory_space<smem>>
    %38 = vector.broadcast %37 : f32 to vector<8x8xf32>
    %39 = arith.addf %36, %38 : vector<8x8xf32>
    %c1_12 = arith.constant 1 : index
    %40 = memref.load %arg4[%c1_12] : memref<16xf32, #tpu.memory_space<smem>>
    %41 = vector.broadcast %40 : f32 to vector<8x8xf32>
    %42 = arith.mulf %41, %31 : vector<8x8xf32>
    %43 = arith.select %33, %39, %42 : vector<8x8xi1>, vector<8x8xf32>
    %44 = arith.addf %25, %43 : vector<8x8xf32>
    %45 = vector.extract_strided_slice %3 {offsets = [0, 2], sizes = [8, 1], strides = [1, 1]} : vector<8x16xf32> to vector<8x1xf32>
    %46 = vector.extract_strided_slice %5 {offsets = [2, 0], sizes = [1, 8], strides = [1, 1]} : vector<16x8xf32> to vector<1x8xf32>
    %47 = vector.broadcast %45 : vector<8x1xf32> to vector<8x8xf32>
    %48 = vector.broadcast %46 : vector<1x8xf32> to vector<8x8xf32>
    %49 = arith.addf %47, %48 : vector<8x8xf32>
    %50 = math.exp %49 : vector<8x8xf32>
    %cst_13 = arith.constant 0.000000e+00 : f32
    %51 = vector.broadcast %cst_13 : f32 to vector<8x8xf32>
    %52 = arith.cmpf ogt, %49, %51 : vector<8x8xf32>
    %c2 = arith.constant 2 : index
    %53 = memref.load %arg3[%c2] : memref<16xf32, #tpu.memory_space<smem>>
    %54 = vector.broadcast %53 : f32 to vector<8x8xf32>
    %55 = arith.mulf %54, %49 : vector<8x8xf32>
    %c2_14 = arith.constant 2 : index
    %56 = memref.load %arg4[%c2_14] : memref<16xf32, #tpu.memory_space<smem>>
    %57 = vector.broadcast %56 : f32 to vector<8x8xf32>
    %58 = arith.addf %55, %57 : vector<8x8xf32>
    %c2_15 = arith.constant 2 : index
    %59 = memref.load %arg4[%c2_15] : memref<16xf32, #tpu.memory_space<smem>>
    %60 = vector.broadcast %59 : f32 to vector<8x8xf32>
    %61 = arith.mulf %60, %50 : vector<8x8xf32>
    %62 = arith.select %52, %58, %61 : vector<8x8xi1>, vector<8x8xf32>
    %63 = arith.addf %44, %62 : vector<8x8xf32>
    %64 = vector.extract_strided_slice %3 {offsets = [0, 3], sizes = [8, 1], strides = [1, 1]} : vector<8x16xf32> to vector<8x1xf32>
    %65 = vector.extract_strided_slice %5 {offsets = [3, 0], sizes = [1, 8], strides = [1, 1]} : vector<16x8xf32> to vector<1x8xf32>
    %66 = vector.broadcast %64 : vector<8x1xf32> to vector<8x8xf32>
    %67 = vector.broadcast %65 : vector<1x8xf32> to vector<8x8xf32>
    %68 = arith.addf %66, %67 : vector<8x8xf32>
    %69 = math.exp %68 : vector<8x8xf32>
    %cst_16 = arith.constant 0.000000e+00 : f32
    %70 = vector.broadcast %cst_16 : f32 to vector<8x8xf32>
    %71 = arith.cmpf ogt, %68, %70 : vector<8x8xf32>
    %c3 = arith.constant 3 : index
    %72 = memref.load %arg3[%c3] : memref<16xf32, #tpu.memory_space<smem>>
    %73 = vector.broadcast %72 : f32 to vector<8x8xf32>
    %74 = arith.mulf %73, %68 : vector<8x8xf32>
    %c3_17 = arith.constant 3 : index
    %75 = memref.load %arg4[%c3_17] : memref<16xf32, #tpu.memory_space<smem>>
    %76 = vector.broadcast %75 : f32 to vector<8x8xf32>
    %77 = arith.addf %74, %76 : vector<8x8xf32>
    %c3_18 = arith.constant 3 : index
    %78 = memref.load %arg4[%c3_18] : memref<16xf32, #tpu.memory_space<smem>>
    %79 = vector.broadcast %78 : f32 to vector<8x8xf32>
    %80 = arith.mulf %79, %69 : vector<8x8xf32>
    %81 = arith.select %71, %77, %80 : vector<8x8xi1>, vector<8x8xf32>
    %82 = arith.addf %63, %81 : vector<8x8xf32>
    %83 = vector.extract_strided_slice %3 {offsets = [0, 4], sizes = [8, 1], strides = [1, 1]} : vector<8x16xf32> to vector<8x1xf32>
    %84 = vector.extract_strided_slice %5 {offsets = [4, 0], sizes = [1, 8], strides = [1, 1]} : vector<16x8xf32> to vector<1x8xf32>
    %85 = vector.broadcast %83 : vector<8x1xf32> to vector<8x8xf32>
    %86 = vector.broadcast %84 : vector<1x8xf32> to vector<8x8xf32>
    %87 = arith.addf %85, %86 : vector<8x8xf32>
    %88 = math.exp %87 : vector<8x8xf32>
    %cst_19 = arith.constant 0.000000e+00 : f32
    %89 = vector.broadcast %cst_19 : f32 to vector<8x8xf32>
    %90 = arith.cmpf ogt, %87, %89 : vector<8x8xf32>
    %c4 = arith.constant 4 : index
    %91 = memref.load %arg3[%c4] : memref<16xf32, #tpu.memory_space<smem>>
    %92 = vector.broadcast %91 : f32 to vector<8x8xf32>
    %93 = arith.mulf %92, %87 : vector<8x8xf32>
    %c4_20 = arith.constant 4 : index
    %94 = memref.load %arg4[%c4_20] : memref<16xf32, #tpu.memory_space<smem>>
    %95 = vector.broadcast %94 : f32 to vector<8x8xf32>
    %96 = arith.addf %93, %95 : vector<8x8xf32>
    %c4_21 = arith.constant 4 : index
    %97 = memref.load %arg4[%c4_21] : memref<16xf32, #tpu.memory_space<smem>>
    %98 = vector.broadcast %97 : f32 to vector<8x8xf32>
    %99 = arith.mulf %98, %88 : vector<8x8xf32>
    %100 = arith.select %90, %96, %99 : vector<8x8xi1>, vector<8x8xf32>
    %101 = arith.addf %82, %100 : vector<8x8xf32>
    %102 = vector.extract_strided_slice %3 {offsets = [0, 5], sizes = [8, 1], strides = [1, 1]} : vector<8x16xf32> to vector<8x1xf32>
    %103 = vector.extract_strided_slice %5 {offsets = [5, 0], sizes = [1, 8], strides = [1, 1]} : vector<16x8xf32> to vector<1x8xf32>
    %104 = vector.broadcast %102 : vector<8x1xf32> to vector<8x8xf32>
    %105 = vector.broadcast %103 : vector<1x8xf32> to vector<8x8xf32>
    %106 = arith.addf %104, %105 : vector<8x8xf32>
    %107 = math.exp %106 : vector<8x8xf32>
    %cst_22 = arith.constant 0.000000e+00 : f32
    %108 = vector.broadcast %cst_22 : f32 to vector<8x8xf32>
    %109 = arith.cmpf ogt, %106, %108 : vector<8x8xf32>
    %c5 = arith.constant 5 : index
    %110 = memref.load %arg3[%c5] : memref<16xf32, #tpu.memory_space<smem>>
    %111 = vector.broadcast %110 : f32 to vector<8x8xf32>
    %112 = arith.mulf %111, %106 : vector<8x8xf32>
    %c5_23 = arith.constant 5 : index
    %113 = memref.load %arg4[%c5_23] : memref<16xf32, #tpu.memory_space<smem>>
    %114 = vector.broadcast %113 : f32 to vector<8x8xf32>
    %115 = arith.addf %112, %114 : vector<8x8xf32>
    %c5_24 = arith.constant 5 : index
    %116 = memref.load %arg4[%c5_24] : memref<16xf32, #tpu.memory_space<smem>>
    %117 = vector.broadcast %116 : f32 to vector<8x8xf32>
    %118 = arith.mulf %117, %107 : vector<8x8xf32>
    %119 = arith.select %109, %115, %118 : vector<8x8xi1>, vector<8x8xf32>
    %120 = arith.addf %101, %119 : vector<8x8xf32>
    %121 = vector.extract_strided_slice %3 {offsets = [0, 6], sizes = [8, 1], strides = [1, 1]} : vector<8x16xf32> to vector<8x1xf32>
    %122 = vector.extract_strided_slice %5 {offsets = [6, 0], sizes = [1, 8], strides = [1, 1]} : vector<16x8xf32> to vector<1x8xf32>
    %123 = vector.broadcast %121 : vector<8x1xf32> to vector<8x8xf32>
    %124 = vector.broadcast %122 : vector<1x8xf32> to vector<8x8xf32>
    %125 = arith.addf %123, %124 : vector<8x8xf32>
    %126 = math.exp %125 : vector<8x8xf32>
    %cst_25 = arith.constant 0.000000e+00 : f32
    %127 = vector.broadcast %cst_25 : f32 to vector<8x8xf32>
    %128 = arith.cmpf ogt, %125, %127 : vector<8x8xf32>
    %c6 = arith.constant 6 : index
    %129 = memref.load %arg3[%c6] : memref<16xf32, #tpu.memory_space<smem>>
    %130 = vector.broadcast %129 : f32 to vector<8x8xf32>
    %131 = arith.mulf %130, %125 : vector<8x8xf32>
    %c6_26 = arith.constant 6 : index
    %132 = memref.load %arg4[%c6_26] : memref<16xf32, #tpu.memory_space<smem>>
    %133 = vector.broadcast %132 : f32 to vector<8x8xf32>
    %134 = arith.addf %131, %133 : vector<8x8xf32>
    %c6_27 = arith.constant 6 : index
    %135 = memref.load %arg4[%c6_27] : memref<16xf32, #tpu.memory_space<smem>>
    %136 = vector.broadcast %135 : f32 to vector<8x8xf32>
    %137 = arith.mulf %136, %126 : vector<8x8xf32>
    %138 = arith.select %128, %134, %137 : vector<8x8xi1>, vector<8x8xf32>
    %139 = arith.addf %120, %138 : vector<8x8xf32>
    %140 = vector.extract_strided_slice %3 {offsets = [0, 7], sizes = [8, 1], strides = [1, 1]} : vector<8x16xf32> to vector<8x1xf32>
    %141 = vector.extract_strided_slice %5 {offsets = [7, 0], sizes = [1, 8], strides = [1, 1]} : vector<16x8xf32> to vector<1x8xf32>
    %142 = vector.broadcast %140 : vector<8x1xf32> to vector<8x8xf32>
    %143 = vector.broadcast %141 : vector<1x8xf32> to vector<8x8xf32>
    %144 = arith.addf %142, %143 : vector<8x8xf32>
    %145 = math.exp %144 : vector<8x8xf32>
    %cst_28 = arith.constant 0.000000e+00 : f32
    %146 = vector.broadcast %cst_28 : f32 to vector<8x8xf32>
    %147 = arith.cmpf ogt, %144, %146 : vector<8x8xf32>
    %c7 = arith.constant 7 : index
    %148 = memref.load %arg3[%c7] : memref<16xf32, #tpu.memory_space<smem>>
    %149 = vector.broadcast %148 : f32 to vector<8x8xf32>
    %150 = arith.mulf %149, %144 : vector<8x8xf32>
    %c7_29 = arith.constant 7 : index
    %151 = memref.load %arg4[%c7_29] : memref<16xf32, #tpu.memory_space<smem>>
    %152 = vector.broadcast %151 : f32 to vector<8x8xf32>
    %153 = arith.addf %150, %152 : vector<8x8xf32>
    %c7_30 = arith.constant 7 : index
    %154 = memref.load %arg4[%c7_30] : memref<16xf32, #tpu.memory_space<smem>>
    %155 = vector.broadcast %154 : f32 to vector<8x8xf32>
    %156 = arith.mulf %155, %145 : vector<8x8xf32>
    %157 = arith.select %147, %153, %156 : vector<8x8xi1>, vector<8x8xf32>
    %158 = arith.addf %139, %157 : vector<8x8xf32>
    %159 = vector.extract_strided_slice %3 {offsets = [0, 8], sizes = [8, 1], strides = [1, 1]} : vector<8x16xf32> to vector<8x1xf32>
    %160 = vector.extract_strided_slice %5 {offsets = [8, 0], sizes = [1, 8], strides = [1, 1]} : vector<16x8xf32> to vector<1x8xf32>
    %161 = vector.broadcast %159 : vector<8x1xf32> to vector<8x8xf32>
    %162 = vector.broadcast %160 : vector<1x8xf32> to vector<8x8xf32>
    %163 = arith.addf %161, %162 : vector<8x8xf32>
    %164 = math.exp %163 : vector<8x8xf32>
    %cst_31 = arith.constant 0.000000e+00 : f32
    %165 = vector.broadcast %cst_31 : f32 to vector<8x8xf32>
    %166 = arith.cmpf ogt, %163, %165 : vector<8x8xf32>
    %c8 = arith.constant 8 : index
    %167 = memref.load %arg3[%c8] : memref<16xf32, #tpu.memory_space<smem>>
    %168 = vector.broadcast %167 : f32 to vector<8x8xf32>
    %169 = arith.mulf %168, %163 : vector<8x8xf32>
    %c8_32 = arith.constant 8 : index
    %170 = memref.load %arg4[%c8_32] : memref<16xf32, #tpu.memory_space<smem>>
    %171 = vector.broadcast %170 : f32 to vector<8x8xf32>
    %172 = arith.addf %169, %171 : vector<8x8xf32>
    %c8_33 = arith.constant 8 : index
    %173 = memref.load %arg4[%c8_33] : memref<16xf32, #tpu.memory_space<smem>>
    %174 = vector.broadcast %173 : f32 to vector<8x8xf32>
    %175 = arith.mulf %174, %164 : vector<8x8xf32>
    %176 = arith.select %166, %172, %175 : vector<8x8xi1>, vector<8x8xf32>
    %177 = arith.addf %158, %176 : vector<8x8xf32>
    %178 = vector.extract_strided_slice %3 {offsets = [0, 9], sizes = [8, 1], strides = [1, 1]} : vector<8x16xf32> to vector<8x1xf32>
    %179 = vector.extract_strided_slice %5 {offsets = [9, 0], sizes = [1, 8], strides = [1, 1]} : vector<16x8xf32> to vector<1x8xf32>
    %180 = vector.broadcast %178 : vector<8x1xf32> to vector<8x8xf32>
    %181 = vector.broadcast %179 : vector<1x8xf32> to vector<8x8xf32>
    %182 = arith.addf %180, %181 : vector<8x8xf32>
    %183 = math.exp %182 : vector<8x8xf32>
    %cst_34 = arith.constant 0.000000e+00 : f32
    %184 = vector.broadcast %cst_34 : f32 to vector<8x8xf32>
    %185 = arith.cmpf ogt, %182, %184 : vector<8x8xf32>
    %c9 = arith.constant 9 : index
    %186 = memref.load %arg3[%c9] : memref<16xf32, #tpu.memory_space<smem>>
    %187 = vector.broadcast %186 : f32 to vector<8x8xf32>
    %188 = arith.mulf %187, %182 : vector<8x8xf32>
    %c9_35 = arith.constant 9 : index
    %189 = memref.load %arg4[%c9_35] : memref<16xf32, #tpu.memory_space<smem>>
    %190 = vector.broadcast %189 : f32 to vector<8x8xf32>
    %191 = arith.addf %188, %190 : vector<8x8xf32>
    %c9_36 = arith.constant 9 : index
    %192 = memref.load %arg4[%c9_36] : memref<16xf32, #tpu.memory_space<smem>>
    %193 = vector.broadcast %192 : f32 to vector<8x8xf32>
    %194 = arith.mulf %193, %183 : vector<8x8xf32>
    %195 = arith.select %185, %191, %194 : vector<8x8xi1>, vector<8x8xf32>
    %196 = arith.addf %177, %195 : vector<8x8xf32>
    %197 = vector.extract_strided_slice %3 {offsets = [0, 10], sizes = [8, 1], strides = [1, 1]} : vector<8x16xf32> to vector<8x1xf32>
    %198 = vector.extract_strided_slice %5 {offsets = [10, 0], sizes = [1, 8], strides = [1, 1]} : vector<16x8xf32> to vector<1x8xf32>
    %199 = vector.broadcast %197 : vector<8x1xf32> to vector<8x8xf32>
    %200 = vector.broadcast %198 : vector<1x8xf32> to vector<8x8xf32>
    %201 = arith.addf %199, %200 : vector<8x8xf32>
    %202 = math.exp %201 : vector<8x8xf32>
    %cst_37 = arith.constant 0.000000e+00 : f32
    %203 = vector.broadcast %cst_37 : f32 to vector<8x8xf32>
    %204 = arith.cmpf ogt, %201, %203 : vector<8x8xf32>
    %c10 = arith.constant 10 : index
    %205 = memref.load %arg3[%c10] : memref<16xf32, #tpu.memory_space<smem>>
    %206 = vector.broadcast %205 : f32 to vector<8x8xf32>
    %207 = arith.mulf %206, %201 : vector<8x8xf32>
    %c10_38 = arith.constant 10 : index
    %208 = memref.load %arg4[%c10_38] : memref<16xf32, #tpu.memory_space<smem>>
    %209 = vector.broadcast %208 : f32 to vector<8x8xf32>
    %210 = arith.addf %207, %209 : vector<8x8xf32>
    %c10_39 = arith.constant 10 : index
    %211 = memref.load %arg4[%c10_39] : memref<16xf32, #tpu.memory_space<smem>>
    %212 = vector.broadcast %211 : f32 to vector<8x8xf32>
    %213 = arith.mulf %212, %202 : vector<8x8xf32>
    %214 = arith.select %204, %210, %213 : vector<8x8xi1>, vector<8x8xf32>
    %215 = arith.addf %196, %214 : vector<8x8xf32>
    %216 = vector.extract_strided_slice %3 {offsets = [0, 11], sizes = [8, 1], strides = [1, 1]} : vector<8x16xf32> to vector<8x1xf32>
    %217 = vector.extract_strided_slice %5 {offsets = [11, 0], sizes = [1, 8], strides = [1, 1]} : vector<16x8xf32> to vector<1x8xf32>
    %218 = vector.broadcast %216 : vector<8x1xf32> to vector<8x8xf32>
    %219 = vector.broadcast %217 : vector<1x8xf32> to vector<8x8xf32>
    %220 = arith.addf %218, %219 : vector<8x8xf32>
    %221 = math.exp %220 : vector<8x8xf32>
    %cst_40 = arith.constant 0.000000e+00 : f32
    %222 = vector.broadcast %cst_40 : f32 to vector<8x8xf32>
    %223 = arith.cmpf ogt, %220, %222 : vector<8x8xf32>
    %c11 = arith.constant 11 : index
    %224 = memref.load %arg3[%c11] : memref<16xf32, #tpu.memory_space<smem>>
    %225 = vector.broadcast %224 : f32 to vector<8x8xf32>
    %226 = arith.mulf %225, %220 : vector<8x8xf32>
    %c11_41 = arith.constant 11 : index
    %227 = memref.load %arg4[%c11_41] : memref<16xf32, #tpu.memory_space<smem>>
    %228 = vector.broadcast %227 : f32 to vector<8x8xf32>
    %229 = arith.addf %226, %228 : vector<8x8xf32>
    %c11_42 = arith.constant 11 : index
    %230 = memref.load %arg4[%c11_42] : memref<16xf32, #tpu.memory_space<smem>>
    %231 = vector.broadcast %230 : f32 to vector<8x8xf32>
    %232 = arith.mulf %231, %221 : vector<8x8xf32>
    %233 = arith.select %223, %229, %232 : vector<8x8xi1>, vector<8x8xf32>
    %234 = arith.addf %215, %233 : vector<8x8xf32>
    %235 = vector.extract_strided_slice %3 {offsets = [0, 12], sizes = [8, 1], strides = [1, 1]} : vector<8x16xf32> to vector<8x1xf32>
    %236 = vector.extract_strided_slice %5 {offsets = [12, 0], sizes = [1, 8], strides = [1, 1]} : vector<16x8xf32> to vector<1x8xf32>
    %237 = vector.broadcast %235 : vector<8x1xf32> to vector<8x8xf32>
    %238 = vector.broadcast %236 : vector<1x8xf32> to vector<8x8xf32>
    %239 = arith.addf %237, %238 : vector<8x8xf32>
    %240 = math.exp %239 : vector<8x8xf32>
    %cst_43 = arith.constant 0.000000e+00 : f32
    %241 = vector.broadcast %cst_43 : f32 to vector<8x8xf32>
    %242 = arith.cmpf ogt, %239, %241 : vector<8x8xf32>
    %c12 = arith.constant 12 : index
    %243 = memref.load %arg3[%c12] : memref<16xf32, #tpu.memory_space<smem>>
    %244 = vector.broadcast %243 : f32 to vector<8x8xf32>
    %245 = arith.mulf %244, %239 : vector<8x8xf32>
    %c12_44 = arith.constant 12 : index
    %246 = memref.load %arg4[%c12_44] : memref<16xf32, #tpu.memory_space<smem>>
    %247 = vector.broadcast %246 : f32 to vector<8x8xf32>
    %248 = arith.addf %245, %247 : vector<8x8xf32>
    %c12_45 = arith.constant 12 : index
    %249 = memref.load %arg4[%c12_45] : memref<16xf32, #tpu.memory_space<smem>>
    %250 = vector.broadcast %249 : f32 to vector<8x8xf32>
    %251 = arith.mulf %250, %240 : vector<8x8xf32>
    %252 = arith.select %242, %248, %251 : vector<8x8xi1>, vector<8x8xf32>
    %253 = arith.addf %234, %252 : vector<8x8xf32>
    %254 = vector.extract_strided_slice %3 {offsets = [0, 13], sizes = [8, 1], strides = [1, 1]} : vector<8x16xf32> to vector<8x1xf32>
    %255 = vector.extract_strided_slice %5 {offsets = [13, 0], sizes = [1, 8], strides = [1, 1]} : vector<16x8xf32> to vector<1x8xf32>
    %256 = vector.broadcast %254 : vector<8x1xf32> to vector<8x8xf32>
    %257 = vector.broadcast %255 : vector<1x8xf32> to vector<8x8xf32>
    %258 = arith.addf %256, %257 : vector<8x8xf32>
    %259 = math.exp %258 : vector<8x8xf32>
    %cst_46 = arith.constant 0.000000e+00 : f32
    %260 = vector.broadcast %cst_46 : f32 to vector<8x8xf32>
    %261 = arith.cmpf ogt, %258, %260 : vector<8x8xf32>
    %c13 = arith.constant 13 : index
    %262 = memref.load %arg3[%c13] : memref<16xf32, #tpu.memory_space<smem>>
    %263 = vector.broadcast %262 : f32 to vector<8x8xf32>
    %264 = arith.mulf %263, %258 : vector<8x8xf32>
    %c13_47 = arith.constant 13 : index
    %265 = memref.load %arg4[%c13_47] : memref<16xf32, #tpu.memory_space<smem>>
    %266 = vector.broadcast %265 : f32 to vector<8x8xf32>
    %267 = arith.addf %264, %266 : vector<8x8xf32>
    %c13_48 = arith.constant 13 : index
    %268 = memref.load %arg4[%c13_48] : memref<16xf32, #tpu.memory_space<smem>>
    %269 = vector.broadcast %268 : f32 to vector<8x8xf32>
    %270 = arith.mulf %269, %259 : vector<8x8xf32>
    %271 = arith.select %261, %267, %270 : vector<8x8xi1>, vector<8x8xf32>
    %272 = arith.addf %253, %271 : vector<8x8xf32>
    %273 = vector.extract_strided_slice %3 {offsets = [0, 14], sizes = [8, 1], strides = [1, 1]} : vector<8x16xf32> to vector<8x1xf32>
    %274 = vector.extract_strided_slice %5 {offsets = [14, 0], sizes = [1, 8], strides = [1, 1]} : vector<16x8xf32> to vector<1x8xf32>
    %275 = vector.broadcast %273 : vector<8x1xf32> to vector<8x8xf32>
    %276 = vector.broadcast %274 : vector<1x8xf32> to vector<8x8xf32>
    %277 = arith.addf %275, %276 : vector<8x8xf32>
    %278 = math.exp %277 : vector<8x8xf32>
    %cst_49 = arith.constant 0.000000e+00 : f32
    %279 = vector.broadcast %cst_49 : f32 to vector<8x8xf32>
    %280 = arith.cmpf ogt, %277, %279 : vector<8x8xf32>
    %c14 = arith.constant 14 : index
    %281 = memref.load %arg3[%c14] : memref<16xf32, #tpu.memory_space<smem>>
    %282 = vector.broadcast %281 : f32 to vector<8x8xf32>
    %283 = arith.mulf %282, %277 : vector<8x8xf32>
    %c14_50 = arith.constant 14 : index
    %284 = memref.load %arg4[%c14_50] : memref<16xf32, #tpu.memory_space<smem>>
    %285 = vector.broadcast %284 : f32 to vector<8x8xf32>
    %286 = arith.addf %283, %285 : vector<8x8xf32>
    %c14_51 = arith.constant 14 : index
    %287 = memref.load %arg4[%c14_51] : memref<16xf32, #tpu.memory_space<smem>>
    %288 = vector.broadcast %287 : f32 to vector<8x8xf32>
    %289 = arith.mulf %288, %278 : vector<8x8xf32>
    %290 = arith.select %280, %286, %289 : vector<8x8xi1>, vector<8x8xf32>
    %291 = arith.addf %272, %290 : vector<8x8xf32>
    %292 = vector.extract_strided_slice %3 {offsets = [0, 15], sizes = [8, 1], strides = [1, 1]} : vector<8x16xf32> to vector<8x1xf32>
    %293 = vector.extract_strided_slice %5 {offsets = [15, 0], sizes = [1, 8], strides = [1, 1]} : vector<16x8xf32> to vector<1x8xf32>
    %294 = vector.broadcast %292 : vector<8x1xf32> to vector<8x8xf32>
    %295 = vector.broadcast %293 : vector<1x8xf32> to vector<8x8xf32>
    %296 = arith.addf %294, %295 : vector<8x8xf32>
    %297 = math.exp %296 : vector<8x8xf32>
    %cst_52 = arith.constant 0.000000e+00 : f32
    %298 = vector.broadcast %cst_52 : f32 to vector<8x8xf32>
    %299 = arith.cmpf ogt, %296, %298 : vector<8x8xf32>
    %c15 = arith.constant 15 : index
    %300 = memref.load %arg3[%c15] : memref<16xf32, #tpu.memory_space<smem>>
    %301 = vector.broadcast %300 : f32 to vector<8x8xf32>
    %302 = arith.mulf %301, %296 : vector<8x8xf32>
    %c15_53 = arith.constant 15 : index
    %303 = memref.load %arg4[%c15_53] : memref<16xf32, #tpu.memory_space<smem>>
    %304 = vector.broadcast %303 : f32 to vector<8x8xf32>
    %305 = arith.addf %302, %304 : vector<8x8xf32>
    %c15_54 = arith.constant 15 : index
    %306 = memref.load %arg4[%c15_54] : memref<16xf32, #tpu.memory_space<smem>>
    %307 = vector.broadcast %306 : f32 to vector<8x8xf32>
    %308 = arith.mulf %307, %297 : vector<8x8xf32>
    %309 = arith.select %299, %305, %308 : vector<8x8xi1>, vector<8x8xf32>
    %310 = arith.addf %291, %309 : vector<8x8xf32>
    %c0_55 = arith.constant 0 : index
    %c0_56 = arith.constant 0 : index
    %c0_57 = arith.constant 0 : index
    %311 = vector.load %arg8[%c0_55, %c0_56, %c0_57] : memref<1x8x8xf32, #tpu.memory_space<vmem>>, vector<1x8x8xf32>
    %312 = vector.shape_cast %311 : vector<1x8x8xf32> to vector<8x8xf32>
    %313 = vector.shape_cast %310 : vector<8x8xf32> to vector<1x8x8xf32>
    tpu.vector_store %arg8[%c0_55, %c0_56, %c0_57], %313 {strides = array<i32>} : memref<1x8x8xf32, #tpu.memory_space<vmem>>, vector<1x8x8xf32>,
    return
  }
  func.func @transform_0(%arg0: i32, %arg1: i32, %arg2: i32) -> i32 {
    %c0_i32 = arith.constant 0 : i32
    %c0_i32_0 = arith.constant 0 : i32
    return %c0_i32 : i32
  }
  func.func @transform_1(%arg0: i32, %arg1: i32, %arg2: i32) -> i32 {
    %c0_i32 = arith.constant 0 : i32
    %c0_i32_0 = arith.constant 0 : i32
    return %c0_i32 : i32
  }
  func.func @transform_2(%arg0: i32, %arg1: i32, %arg2: i32) -> i32 {
    %c0_i32 = arith.constant 0 : i32
    %c0_i32_0 = arith.constant 0 : i32
    return %c0_i32 : i32
  }
  func.func @transform_3(%arg0: i32, %arg1: i32, %arg2: i32) -> (i32, i32, i32) {
    %c0_i32 = arith.constant 0 : i32
    %c0_i32_0 = arith.constant 0 : i32
    return %arg0, %arg1, %c0_i32 : i32, i32, i32
  }
  func.func @transform_4(%arg0: i32, %arg1: i32, %arg2: i32) -> (i32, i32, i32) {
    %c0_i32 = arith.constant 0 : i32
    %c0_i32_0 = arith.constant 0 : i32
    return %arg0, %c0_i32, %arg2 : i32, i32, i32
  }
  func.func @transform_5(%arg0: i32, %arg1: i32, %arg2: i32) -> (i32, i32, i32) {
    %c0_i32 = arith.constant 0 : i32
    return %arg0, %arg1, %arg2 : i32, i32, i32
  }
}

</mosaic_0001>

<llo_original>
// kernel: pointnet_pallas.1
$region0: #{pointnet_pallas.1}
  #allocation0 [shape = 'u32[]', space=smem, size = 0x4, offset = 0x4, fixed_abs, tag = 'smem constant byte address 0x4 - core index']
  #allocation1 [shape = 'u32[144,128]{1,0:T(1,128)}', space=vmem, size = 0x12000, scoped, tag = 'internal scratch']
  #allocation2 [shape = 'f32[1]{0:T(128)S(6)}', space=smem, size = 0x200, scoped, tag = 'scoped memory for pointnet_pallas.1']
  %s0 = inlined_call_operand.vmem [shape: f32[16], index: 0, kind: input, shape index: {}]
  %s1 = inlined_call_operand.vmem [shape: f32[16], index: 1, kind: input, shape index: {}]
  %s2 = inlined_call_operand.<no memory space> [shape: f32[1], index: 2, kind: input, shape index: {}]
  %s3 = inlined_call_operand.vmem [shape: f32[2,8,16], index: 3, kind: input, shape index: {}]
  %s4 = inlined_call_operand.vmem [shape: f32[2,16,8], index: 4, kind: input, shape index: {}]
  %s5 = inlined_call_operand.hbm [shape: f32[2,8,8], index: 5, kind: output, shape index: {}]
  %s6 = sld [smem:[#allocation0]]
  $region61: #{pointnet_pallas.1} parent=0
    _
  %s8 = ssub.s32 1, %s6
  %s9 = scalar_select 0, %s8, %s6
  %10 = sst [smem:[#allocation2]] %s2
  $region1: #{pointnet_pallas.1} parent=0
    #allocation3 [shape = 'u8[512]{0}', space=smem, size = 0x200, scoped, tag = 'input window, operand 0, single buffered']
    #allocation4 [shape = 's32[2]{0}', space=sflag, size = 0x8, scoped, tag = 'scoped memory for pointnet_pallas.1']
    #allocation5 [shape = 's32[2]{0}', space=sflag, size = 0x8, scoped, tag = 'scoped memory for pointnet_pallas.1']
    #allocation6 [shape = 'u8[512]{0}', space=smem, size = 0x200, scoped, tag = 'input window, operand 1, single buffered']
    #allocation7 [shape = 's32[1]{0}', space=sflag, size = 0x4, scoped, tag = 'scoped memory for pointnet_pallas.1']
    #allocation8 [shape = 'u8[8192]{0}', space=vmem, size = 0x2000, scoped, tag = 'output window, operand 0']
    %11 = vsyncpa [#allocation5], 0
    %12 = vsyncpa [#allocation7], 0
    %13 = vsyncpa [#allocation4], 0
    %s14 = scalar_lea.sflag [#allocation4], 1
    %15 = vsyncpa %s14, 0
    loop: start=0, step=1, limit=4
    $region2: #{pointnet_pallas.1} parent=1 // loop_pre_header
      _
    $region3: #{pointnet_pallas.1} parent=1 // loop_header
      %s17 = sphi 0, %s21
      %p18 = scmp.ge.s32.totalorder %s17, 4
      %s24 = sphi 0, %s43
      %s25 = sphi 0, %s39
      %s26 = sphi 0, %s35
      %s27 = sphi 0, %s24
      %s28 = sphi 0, %s25
      %s29 = sphi 0, %s26
      %s30 = sphi 0, %s27
      %s31 = sphi 0, %s28
      %s32 = sphi 0, %s29
      %s44 = sphi 0, %s44
      %s46 = sphi 0, %s44
      %s47 = sphi 0, %s46
      %s61 = sphi 0, %s47
      %s65 = sphi 0, %s65
      %s67 = sphi 0, %s65
      %s68 = sphi 0, %s67
      %s82 = sphi 0, %s68
      %s86 = sphi 0, %s86
      %s88 = sphi 0, %s86
      %s89 = sphi 0, %s88
      %s103 = sphi 0, %s89
      %s111 = sphi 0, %s113
      %s114 = sphi 0, %s111
      %s115 = sphi 0, %s114
      %s131 = sphi 0, %s115
      %s139 = sphi 0, %s141
      %s142 = sphi 0, %s139
      %s143 = sphi 0, %s142
      %s159 = sphi 0, %s143
      %s169 = sphi 0, %s171
      %s172 = sphi 0, %s169
      %s173 = sphi 0, %s172
      %s189 = sphi 0, %s173
    $region4: #{pointnet_pallas.1} parent=1 // loop_header_branch
      %20 = sbr.rel (%p18) target = $region8
    $region5: #{pointnet_pallas.1} parent=1 // loop_body
      %s22 = ssub.s32 %s17, 1
      %s23 = ssub.s32 %s17, 2
      %s33 = sadd.s32 1, %s26
      %p34 = scmp.ge.s32.totalorder %s33, 1
      %s35 = scalar_select %p34, 0, %s33
      %s36 = sadd.s32 1, %s25
      %s37 = scalar_select %p34, %s36, %s25
      %p38 = scmp.ge.s32.totalorder %s37, 1
      %s39 = scalar_select %p38, 0, %s37
      %s40 = sadd.s32 1, %s24
      %s41 = scalar_select %p38, %s40, %s24
      %p42 = scmp.ge.s32.totalorder %s41, 2
      %s43 = scalar_select %p42, 0, %s41
      %s45 = sadd.s32 %s44, 1
      %p48 = scmp.eq.s32.totalorder %s17, 1
      %p49 = scmp.ne.s32.totalorder %s44, %s46
      %p50 = scmp.eq.s32.totalorder %s17, 0
      %p51 = por %p49, %p50
      %p52 = scmp.ne.s32.totalorder %s44, %s46
      %p53 = scmp.eq.s32.totalorder %s22, 1
      %p54 = por %p52, %p53
      %p55 = scmp.ne.s32.totalorder %s46, %s47
      %p56 = scmp.eq.s32.totalorder %s22, 0
      %p57 = por %p55, %p56
      %p58 = scmp.ne.s32.totalorder %s46, %s47
      %p59 = scmp.eq.s32.totalorder %s23, 1
      %p60 = por %p58, %p59
      %p62 = scmp.ne.s32.totalorder %s47, %s61
      %p63 = scmp.eq.s32.totalorder %s23, 0
      %p64 = por %p62, %p63
      %s66 = sadd.s32 %s65, 1
      %p69 = scmp.eq.s32.totalorder %s17, 1
      %p70 = scmp.ne.s32.totalorder %s65, %s67
      %p71 = scmp.eq.s32.totalorder %s17, 0
      %p72 = por %p70, %p71
      %p73 = scmp.ne.s32.totalorder %s65, %s67
      %p74 = scmp.eq.s32.totalorder %s22, 1
      %p75 = por %p73, %p74
      %p76 = scmp.ne.s32.totalorder %s67, %s68
      %p77 = scmp.eq.s32.totalorder %s22, 0
      %p78 = por %p76, %p77
      %p79 = scmp.ne.s32.totalorder %s67, %s68
      %p80 = scmp.eq.s32.totalorder %s23, 1
      %p81 = por %p79, %p80
      %p83 = scmp.ne.s32.totalorder %s68, %s82
      %p84 = scmp.eq.s32.totalorder %s23, 0
      %p85 = por %p83, %p84
      %s87 = sadd.s32 %s86, 1
      %p90 = scmp.eq.s32.totalorder %s17, 1
      %p91 = scmp.ne.s32.totalorder %s86, %s88
      %p92 = scmp.eq.s32.totalorder %s17, 0
      %p93 = por %p91, %p92
      %p94 = scmp.ne.s32.totalorder %s86, %s88
      %p95 = scmp.eq.s32.totalorder %s22, 1
      %p96 = por %p94, %p95
      %p97 = scmp.ne.s32.totalorder %s88, %s89
      %p98 = scmp.eq.s32.totalorder %s22, 0
      %p99 = por %p97, %p98
      %p100 = scmp.ne.s32.totalorder %s88, %s89
      %p101 = scmp.eq.s32.totalorder %s23, 1
      %p102 = por %p100, %p101
      %p104 = scmp.ne.s32.totalorder %s89, %s103
      %p105 = scmp.eq.s32.totalorder %s23, 0
      %p106 = por %p104, %p105
      %s107 = ssub.s32 %s24, %s43
      %s108 = ssub.s32 %s25, %s39
      %s109 = sor.u32 %s107, %s108
      %p110 = scmp.eq.s32.totalorder %s109, 0
      %s112 = sadd.s32 %s111, 1
      %s113 = scalar_select %p110, %s111, %s112
      %p116 = pneg %p110
      %p117 = scmp.eq.s32.totalorder %s17, 1
      %p118 = por %p116, %p117
      %p119 = scmp.ne.s32.totalorder %s111, %s114
      %p120 = scmp.eq.s32.totalorder %s17, 0
      %p121 = por %p119, %p120
      %p122 = scmp.ne.s32.totalorder %s111, %s114
      %p123 = scmp.eq.s32.totalorder %s22, 1
      %p124 = por %p122, %p123
      %p125 = scmp.ne.s32.totalorder %s114, %s115
      %p126 = scmp.eq.s32.totalorder %s22, 0
      %p127 = por %p125, %p126
      %p128 = scmp.ne.s32.totalorder %s114, %s115
      %p129 = scmp.eq.s32.totalorder %s23, 1
      %p130 = por %p128, %p129
      %p132 = scmp.ne.s32.totalorder %s115, %s131
      %p133 = scmp.eq.s32.totalorder %s23, 0
      %p134 = por %p132, %p133
      %s135 = ssub.s32 %s24, %s43
      %s136 = ssub.s32 %s26, %s35
      %s137 = sor.u32 %s135, %s136
      %p138 = scmp.eq.s32.totalorder %s137, 0
      %s140 = sadd.s32 %s139, 1
      %s141 = scalar_select %p138, %s139, %s140
      %p144 = pneg %p138
      %p145 = scmp.eq.s32.totalorder %s17, 1
      %p146 = por %p144, %p145
      %p147 = scmp.ne.s32.totalorder %s139, %s142
      %p148 = scmp.eq.s32.totalorder %s17, 0
      %p149 = por %p147, %p148
      %p150 = scmp.ne.s32.totalorder %s139, %s142
      %p151 = scmp.eq.s32.totalorder %s22, 1
      %p152 = por %p150, %p151
      %p153 = scmp.ne.s32.totalorder %s142, %s143
      %p154 = scmp.eq.s32.totalorder %s22, 0
      %p155 = por %p153, %p154
      %p156 = scmp.ne.s32.totalorder %s142, %s143
      %p157 = scmp.eq.s32.totalorder %s23, 1
      %p158 = por %p156, %p157
      %p160 = scmp.ne.s32.totalorder %s143, %s159
      %p161 = scmp.eq.s32.totalorder %s23, 0
      %p162 = por %p160, %p161
      %s163 = ssub.s32 %s24, %s43
      %s164 = ssub.s32 %s25, %s39
      %s165 = sor.u32 %s163, %s164
      %s166 = ssub.s32 %s26, %s35
      %s167 = sor.u32 %s165, %s166
      %p168 = scmp.eq.s32.totalorder %s167, 0
      %s170 = sadd.s32 %s169, 1
      %s171 = scalar_select %p168, %s169, %s170
      %p174 = pneg %p168
      %p175 = scmp.eq.s32.totalorder %s17, 1
      %p176 = por %p174, %p175
      %p177 = scmp.ne.s32.totalorder %s169, %s172
      %p178 = scmp.eq.s32.totalorder %s17, 0
      %p179 = por %p177, %p178
      %p180 = scmp.ne.s32.totalorder %s169, %s172
      %p181 = scmp.eq.s32.totalorder %s22, 1
      %p182 = por %p180, %p181
      %p183 = scmp.ne.s32.totalorder %s172, %s173
      %p184 = scmp.eq.s32.totalorder %s22, 0
      %p185 = por %p183, %p184
      %p186 = scmp.ne.s32.totalorder %s172, %s173
      %p187 = scmp.eq.s32.totalorder %s23, 1
      %p188 = por %p186, %p187
      %p190 = scmp.ne.s32.totalorder %s173, %s189
      %p191 = scmp.eq.s32.totalorder %s23, 0
      %p192 = por %p190, %p191
      %p193 = scmp.le.s32.totalorder 1, %s17
      %p194 = scmp.lt.s32.totalorder %s17, 3
      %p195 = pnand %p193, %p194
      %p196 = pneg %p195
      // Predicated region
      $region9: #{pointnet_pallas.1} parent=5 // pred_check
        _
      $region10: #{pointnet_pallas.1} parent=5 // pred_check_branch
        %198 = sbr.rel (%p195) target = $region12
      $region11: #{pointnet_pallas.1} parent=5 // pred_region
        %s199 = ssub.s32 %s17, 1
        // Predicated region
        $region13: #{pointnet_pallas.1} parent=11 // pred_check
          %p200 = pneg %p57
        $region14: #{pointnet_pallas.1} parent=11 // pred_check_branch
          %202 = sbr.rel (%p200) target = $region16
        $region15: #{pointnet_pallas.1} parent=11 // pred_region
          %s204 = ssub.s32 16, 16
          %205 = vsyncadd [#allocation5], %s204
          %s207 = sshll.u32 %s0, 4
          %s208 = int_to_ptr.vmem [resolvable:$true] %s207
          %210 = dma.vmem_to_smem %s208, 16, [#allocation3], [#allocation5]
        $region16: #{pointnet_pallas.1} parent=11 // pred_fallthru
          _
        // Predicated region
        $region17: #{pointnet_pallas.1} parent=11 // pred_check
          %p211 = pneg %p78
        $region18: #{pointnet_pallas.1} parent=11 // pred_check_branch
          %213 = sbr.rel (%p211) target = $region20
        $region19: #{pointnet_pallas.1} parent=11 // pred_region
          %s215 = ssub.s32 16, 16
          %216 = vsyncadd [#allocation7], %s215
          %s218 = sshll.u32 %s1, 4
          %s219 = int_to_ptr.vmem [resolvable:$true] %s218
          %221 = dma.vmem_to_smem %s219, 16, [#allocation6], [#allocation7]
        $region20: #{pointnet_pallas.1} parent=11 // pred_fallthru
          _
        // Predicated region
        $region21: #{pointnet_pallas.1} parent=11 // pred_check
          %p222 = pneg %p99
        $region22: #{pointnet_pallas.1} parent=11 // pred_check_branch
          %224 = sbr.rel (%p222) target = $region24
        $region23: #{pointnet_pallas.1} parent=11 // pred_region
          _
        $region24: #{pointnet_pallas.1} parent=11 // pred_fallthru
          _
      $region12: #{pointnet_pallas.1} parent=5 // pred_fallthru
        _
      %p225 = scmp.lt.s32.totalorder %s17, 2
      // Predicated region
      $region25: #{pointnet_pallas.1} parent=5 // pred_check
        %p226 = pneg %p225
      $region26: #{pointnet_pallas.1} parent=5 // pred_check_branch
        %228 = sbr.rel (%p226) target = $region28
      $region27: #{pointnet_pallas.1} parent=5 // pred_region
        // Predicated region
        $region29: #{pointnet_pallas.1} parent=27 // pred_check
          %p229 = pneg %p121
        $region30: #{pointnet_pallas.1} parent=27 // pred_check_branch
          %231 = sbr.rel (%p229) target = $region32
        $region31: #{pointnet_pallas.1} parent=27 // pred_region
          %p232 = scmp.lt.s32.totalorder %s24, 1
          %s233 = scalar_select %p232, %s24, 1
          %p234 = scmp.lt.s32.totalorder %s25, 0
          %s235 = scalar_select %p234, %s25, 0
          %s236 = sadd.s32 %s235, %s233
          %s237 = smul.addr %s236, 8
          %s238 = scalar_lea.vmem %s3, %s237
        $region32: #{pointnet_pallas.1} parent=27 // pred_fallthru
          _
        // Predicated region
        $region33: #{pointnet_pallas.1} parent=27 // pred_check
          %p239 = pneg %p149
        $region34: #{pointnet_pallas.1} parent=27 // pred_check_branch
          %241 = sbr.rel (%p239) target = $region36
        $region35: #{pointnet_pallas.1} parent=27 // pred_region
          %p242 = scmp.lt.s32.totalorder %s24, 1
          %s243 = scalar_select %p242, %s24, 1
          %p244 = scmp.lt.s32.totalorder %s26, 0
          %s245 = scalar_select %p244, %s26, 0
          %s246 = smul.addr %s243, 2
          %s247 = sadd.s32 %s245, %s246
          %s248 = smul.addr %s247, 8
          %s249 = scalar_lea.vmem %s4, %s248
        $region36: #{pointnet_pallas.1} parent=27 // pred_fallthru
          _
      $region28: #{pointnet_pallas.1} parent=5 // pred_fallthru
        _
      %p250 = scmp.le.s32.totalorder 1, %s17
      %p251 = scmp.lt.s32.totalorder %s17, 3
      %p252 = pnand %p250, %p251
      %p253 = pneg %p252
      // Predicated region
      $region37: #{pointnet_pallas.1} parent=5 // pred_check
        _
      $region38: #{pointnet_pallas.1} parent=5 // pred_check_branch
        %255 = sbr.rel (%p252) target = $region40
      $region39: #{pointnet_pallas.1} parent=5 // pred_region
        %s256 = ssub.s32 %s17, 1
        // Predicated region
        $region41: #{pointnet_pallas.1} parent=39 // pred_check
          %p257 = pneg %p57
        $region42: #{pointnet_pallas.1} parent=39 // pred_check_branch
          %259 = sbr.rel (%p257) target = $region44
        $region43: #{pointnet_pallas.1} parent=39 // pred_region
          %260 = dma.done [#allocation5], 16
        $region44: #{pointnet_pallas.1} parent=39 // pred_fallthru
          _
        // Predicated region
        $region45: #{pointnet_pallas.1} parent=39 // pred_check
          %p261 = pneg %p78
        $region46: #{pointnet_pallas.1} parent=39 // pred_check_branch
          %263 = sbr.rel (%p261) target = $region48
        $region47: #{pointnet_pallas.1} parent=39 // pred_region
          %264 = dma.done [#allocation7], 16
        $region48: #{pointnet_pallas.1} parent=39 // pred_fallthru
          _
        %265 = sfence
        %p266 = pneg %p57
        %p267 = pneg %p54
        %p268 = pneg %p78
        %p269 = pneg %p75
        %p270 = pneg %p99
        %p271 = pneg %p96
        %p272 = scmp.lt.s32.totalorder %s27, 1
        %s273 = scalar_select %p272, %s27, 1
        %p274 = scmp.lt.s32.totalorder %s28, 0
        %s275 = scalar_select %p274, %s28, 0
        %s276 = sadd.s32 %s275, %s273
        %s277 = smul.addr %s276, 8
        %s278 = scalar_lea.vmem %s3, %s277
        %p279 = pneg %p127
        %p280 = pneg %p124
        %p281 = scmp.lt.s32.totalorder %s27, 1
        %s282 = scalar_select %p281, %s27, 1
        %p283 = scmp.lt.s32.totalorder %s29, 0
        %s284 = scalar_select %p283, %s29, 0
        %s285 = smul.addr %s282, 2
        %s286 = sadd.s32 %s284, %s285
        %s287 = smul.addr %s286, 8
        %s288 = scalar_lea.vmem %s4, %s287
        %p289 = pneg %p155
        %p290 = pneg %p152
        %p291 = pneg %p185
        %p292 = pneg %p182
        %s293 = sand.u32 %s172, 1
        %s294 = scalar_lea.sflag [#allocation4], %s293
        %s295 = sand.u32 %s172, 1
        %s296 = smul.addr %s295, 8
        %s297 = scalar_lea.vmem [#allocation8], %s296
        %p298 = scmp.lt.s32.totalorder %s27, 1
        %s299 = scalar_select %p298, %s27, 1
        %p300 = scmp.lt.s32.totalorder %s28, 0
        %s301 = scalar_select %p300, %s28, 0
        %s302 = sadd.s32 %s301, %s299
        %s303 = smul.addr %s302, 8
        %s304 = scalar_lea.vmem %s3, %s303
        %p305 = scmp.lt.s32.totalorder %s27, 1
        %s306 = scalar_select %p305, %s27, 1
        %p307 = scmp.lt.s32.totalorder %s29, 0
        %s308 = scalar_select %p307, %s29, 0
        %s309 = smul.addr %s306, 2
        %s310 = sadd.s32 %s308, %s309
        %s311 = smul.addr %s310, 8
        %s312 = scalar_lea.vmem %s4, %s311
        %s313 = sld [smem:[#allocation2]]
        %s314 = ssub.f32 0.0, %s313
        %v315 = vld [vmem:[%s304] sm:$0xff]
        %v316 = vld [vmem:[%s312] sm:$0xff]
        %v317 = vld [vmem:[%s312 + $0x8] sm:$0xff]
        %v318 = vstv %s314
        %320 = vset.pattern.permute.xlu0 0
        %321 = vperm.xlu0 %320, %v315
        %v322 = vpop.permute.xlu0 %321
        %v324 = vlaneseq
        %v325 = vshrl.u32 %v324, 7
        %v326 = vsub.s32 0, %v325
        %v327 = vrot.slane %v316, %v326
        %v328 = vadd.f32 %v322, %v327
        %v329 = vmul.f32 %v328, 1.442695
        %v330 = vpow.pop %v329
        %vm331 = vcmp.gt.f32.partialorder %v328, 0.0
        %s332 = sld [smem:[#allocation3]]
        %v333 = vstv %s332
        %v334 = vmul.f32 %v333, %v328
        %s335 = sld [smem:[#allocation6]]
        %v336 = vstv %s335
        %v337 = vadd.f32 %v334, %v336
        %v338 = vmul.f32 %v336, %v330
        %v339 = vsel %vm331, %v337, %v338
        %v340 = vadd.f32 %v318, %v339
        %341 = vset.pattern.permute.xlu0 1
        %342 = vperm.xlu0 %341, %v315
        %v343 = vpop.permute.xlu0 %342
        %v345 = vlaneseq
        %v346 = vshrl.u32 %v345, 7
        %v347 = vsub.s32 1, %v346
        %v348 = vrot.slane %v316, %v347
        %v349 = vadd.f32 %v343, %v348
        %v350 = vmul.f32 %v349, 1.442695
        %v351 = vpow.pop %v350
        %vm352 = vcmp.gt.f32.partialorder %v349, 0.0
        %s353 = sld [smem:[#allocation3 + $0x1]]
        %v354 = vstv %s353
        %v355 = vmul.f32 %v354, %v349
        %s356 = sld [smem:[#allocation6 + $0x1]]
        %v357 = vstv %s356
        %v358 = vadd.f32 %v355, %v357
        %v359 = vmul.f32 %v357, %v351
        %v360 = vsel %vm352, %v358, %v359
        %v361 = vadd.f32 %v340, %v360
        %362 = vset.pattern.permute.xlu0 2
        %363 = vperm.xlu0 %362, %v315
        %v364 = vpop.permute.xlu0 %363
        %v366 = vlaneseq
        %v367 = vshrl.u32 %v366, 7
        %v368 = vsub.s32 2, %v367
        %v369 = vrot.slane %v316, %v368
        %v370 = vadd.f32 %v364, %v369
        %v371 = vmul.f32 %v370, 1.442695
        %v372 = vpow.pop %v371
        %vm373 = vcmp.gt.f32.partialorder %v370, 0.0
        %s374 = sld [smem:[#allocation3 + $0x2]]
        %v375 = vstv %s374
        %v376 = vmul.f32 %v375, %v370
        %s377 = sld [smem:[#allocation6 + $0x2]]
        %v378 = vstv %s377
        %v379 = vadd.f32 %v376, %v378
        %v380 = vmul.f32 %v378, %v372
        %v381 = vsel %vm373, %v379, %v380
        %v382 = vadd.f32 %v361, %v381
        %383 = vset.pattern.permute.xlu0 3
        %384 = vperm.xlu0 %383, %v315
        %v385 = vpop.permute.xlu0 %384
        %v387 = vlaneseq
        %v388 = vshrl.u32 %v387, 7
        %v389 = vsub.s32 3, %v388
        %v390 = vrot.slane %v316, %v389
        %v391 = vadd.f32 %v385, %v390
        %v392 = vmul.f32 %v391, 1.442695
        %v393 = vpow.pop %v392
        %vm394 = vcmp.gt.f32.partialorder %v391, 0.0
        %s395 = sld [smem:[#allocation3 + $0x3]]
        %v396 = vstv %s395
        %v397 = vmul.f32 %v396, %v391
        %s398 = sld [smem:[#allocation6 + $0x3]]
        %v399 = vstv %s398
        %v400 = vadd.f32 %v397, %v399
        %v401 = vmul.f32 %v399, %v393
        %v402 = vsel %vm394, %v400, %v401
        %v403 = vadd.f32 %v382, %v402
        %404 = vset.pattern.permute.xlu0 4
        %405 = vperm.xlu0 %404, %v315
        %v406 = vpop.permute.xlu0 %405
        %v408 = vlaneseq
        %v409 = vshrl.u32 %v408, 7
        %v410 = vsub.s32 4, %v409
        %v411 = vrot.slane %v316, %v410
        %v412 = vadd.f32 %v406, %v411
        %v413 = vmul.f32 %v412, 1.442695
        %v414 = vpow.pop %v413
        %vm415 = vcmp.gt.f32.partialorder %v412, 0.0
        %s416 = sld [smem:[#allocation3 + $0x4]]
        %v417 = vstv %s416
        %v418 = vmul.f32 %v417, %v412
        %s419 = sld [smem:[#allocation6 + $0x4]]
        %v420 = vstv %s419
        %v421 = vadd.f32 %v418, %v420
        %v422 = vmul.f32 %v420, %v414
        %v423 = vsel %vm415, %v421, %v422
        %v424 = vadd.f32 %v403, %v423
        %425 = vset.pattern.permute.xlu0 5
        %426 = vperm.xlu0 %425, %v315
        %v427 = vpop.permute.xlu0 %426
        %v429 = vlaneseq
        %v430 = vshrl.u32 %v429, 7
        %v431 = vsub.s32 5, %v430
        %v432 = vrot.slane %v316, %v431
        %v433 = vadd.f32 %v427, %v432
        %v434 = vmul.f32 %v433, 1.442695
        %v435 = vpow.pop %v434
        %vm436 = vcmp.gt.f32.partialorder %v433, 0.0
        %s437 = sld [smem:[#allocation3 + $0x5]]
        %v438 = vstv %s437
        %v439 = vmul.f32 %v438, %v433
        %s440 = sld [smem:[#allocation6 + $0x5]]
        %v441 = vstv %s440
        %v442 = vadd.f32 %v439, %v441
        %v443 = vmul.f32 %v441, %v435
        %v444 = vsel %vm436, %v442, %v443
        %v445 = vadd.f32 %v424, %v444
        %446 = vset.pattern.permute.xlu0 6
        %447 = vperm.xlu0 %446, %v315
        %v448 = vpop.permute.xlu0 %447
        %v450 = vlaneseq
        %v451 = vshrl.u32 %v450, 7
        %v452 = vsub.s32 6, %v451
        %v453 = vrot.slane %v316, %v452
        %v454 = vadd.f32 %v448, %v453
        %v455 = vmul.f32 %v454, 1.442695
        %v456 = vpow.pop %v455
        %vm457 = vcmp.gt.f32.partialorder %v454, 0.0
        %s458 = sld [smem:[#allocation3 + $0x6]]
        %v459 = vstv %s458
        %v460 = vmul.f32 %v459, %v454
        %s461 = sld [smem:[#allocation6 + $0x6]]
        %v462 = vstv %s461
        %v463 = vadd.f32 %v460, %v462
        %v464 = vmul.f32 %v462, %v456
        %v465 = vsel %vm457, %v463, %v464
        %v466 = vadd.f32 %v445, %v465
        %467 = vset.pattern.permute.xlu0 7
        %468 = vperm.xlu0 %467, %v315
        %v469 = vpop.permute.xlu0 %468
        %v471 = vlaneseq
        %v472 = vshrl.u32 %v471, 7
        %v473 = vsub.s32 7, %v472
        %v474 = vrot.slane %v316, %v473
        %v475 = vadd.f32 %v469, %v474
        %v476 = vmul.f32 %v475, 1.442695
        %v477 = vpow.pop %v476
        %vm478 = vcmp.gt.f32.partialorder %v475, 0.0
        %s479 = sld [smem:[#allocation3 + $0x7]]
        %v480 = vstv %s479
        %v481 = vmul.f32 %v480, %v475
        %s482 = sld [smem:[#allocation6 + $0x7]]
        %v483 = vstv %s482
        %v484 = vadd.f32 %v481, %v483
        %v485 = vmul.f32 %v483, %v477
        %v486 = vsel %vm478, %v484, %v485
        %v487 = vadd.f32 %v466, %v486
        %488 = vset.pattern.permute.xlu0 8
        %489 = vperm.xlu0 %488, %v315
        %v490 = vpop.permute.xlu0 %489
        %v492 = vlaneseq
        %v493 = vshrl.u32 %v492, 7
        %v494 = vsub.s32 0, %v493
        %v495 = vrot.slane %v317, %v494
        %v496 = vadd.f32 %v490, %v495
        %v497 = vmul.f32 %v496, 1.442695
        %v498 = vpow.pop %v497
        %vm499 = vcmp.gt.f32.partialorder %v496, 0.0
        %s500 = sld [smem:[#allocation3 + $0x8]]
        %v501 = vstv %s500
        %v502 = vmul.f32 %v501, %v496
        %s503 = sld [smem:[#allocation6 + $0x8]]
        %v504 = vstv %s503
        %v505 = vadd.f32 %v502, %v504
        %v506 = vmul.f32 %v504, %v498
        %v507 = vsel %vm499, %v505, %v506
        %v508 = vadd.f32 %v487, %v507
        %509 = vset.pattern.permute.xlu0 9
        %510 = vperm.xlu0 %509, %v315
        %v511 = vpop.permute.xlu0 %510
        %v513 = vlaneseq
        %v514 = vshrl.u32 %v513, 7
        %v515 = vsub.s32 1, %v514
        %v516 = vrot.slane %v317, %v515
        %v517 = vadd.f32 %v511, %v516
        %v518 = vmul.f32 %v517, 1.442695
        %v519 = vpow.pop %v518
        %vm520 = vcmp.gt.f32.partialorder %v517, 0.0
        %s521 = sld [smem:[#allocation3 + $0x9]]
        %v522 = vstv %s521
        %v523 = vmul.f32 %v522, %v517
        %s524 = sld [smem:[#allocation6 + $0x9]]
        %v525 = vstv %s524
        %v526 = vadd.f32 %v523, %v525
        %v527 = vmul.f32 %v525, %v519
        %v528 = vsel %vm520, %v526, %v527
        %v529 = vadd.f32 %v508, %v528
        %530 = vset.pattern.permute.xlu0 10
        %531 = vperm.xlu0 %530, %v315
        %v532 = vpop.permute.xlu0 %531
        %v534 = vlaneseq
        %v535 = vshrl.u32 %v534, 7
        %v536 = vsub.s32 2, %v535
        %v537 = vrot.slane %v317, %v536
        %v538 = vadd.f32 %v532, %v537
        %v539 = vmul.f32 %v538, 1.442695
        %v540 = vpow.pop %v539
        %vm541 = vcmp.gt.f32.partialorder %v538, 0.0
        %s542 = sld [smem:[#allocation3 + $0xa]]
        %v543 = vstv %s542
        %v544 = vmul.f32 %v543, %v538
        %s545 = sld [smem:[#allocation6 + $0xa]]
        %v546 = vstv %s545
        %v547 = vadd.f32 %v544, %v546
        %v548 = vmul.f32 %v546, %v540
        %v549 = vsel %vm541, %v547, %v548
        %v550 = vadd.f32 %v529, %v549
        %551 = vset.pattern.permute.xlu0 11
        %552 = vperm.xlu0 %551, %v315
        %v553 = vpop.permute.xlu0 %552
        %v555 = vlaneseq
        %v556 = vshrl.u32 %v555, 7
        %v557 = vsub.s32 3, %v556
        %v558 = vrot.slane %v317, %v557
        %v559 = vadd.f32 %v553, %v558
        %v560 = vmul.f32 %v559, 1.442695
        %v561 = vpow.pop %v560
        %vm562 = vcmp.gt.f32.partialorder %v559, 0.0
        %s563 = sld [smem:[#allocation3 + $0xb]]
        %v564 = vstv %s563
        %v565 = vmul.f32 %v564, %v559
        %s566 = sld [smem:[#allocation6 + $0xb]]
        %v567 = vstv %s566
        %v568 = vadd.f32 %v565, %v567
        %v569 = vmul.f32 %v567, %v561
        %v570 = vsel %vm562, %v568, %v569
        %v571 = vadd.f32 %v550, %v570
        %572 = vset.pattern.permute.xlu0 12
        %573 = vperm.xlu0 %572, %v315
        %v574 = vpop.permute.xlu0 %573
        %v576 = vlaneseq
        %v577 = vshrl.u32 %v576, 7
        %v578 = vsub.s32 4, %v577
        %v579 = vrot.slane %v317, %v578
        %v580 = vadd.f32 %v574, %v579
        %v581 = vmul.f32 %v580, 1.442695
        %v582 = vpow.pop %v581
        %vm583 = vcmp.gt.f32.partialorder %v580, 0.0
        %s584 = sld [smem:[#allocation3 + $0xc]]
        %v585 = vstv %s584
        %v586 = vmul.f32 %v585, %v580
        %s587 = sld [smem:[#allocation6 + $0xc]]
        %v588 = vstv %s587
        %v589 = vadd.f32 %v586, %v588
        %v590 = vmul.f32 %v588, %v582
        %v591 = vsel %vm583, %v589, %v590
        %v592 = vadd.f32 %v571, %v591
        %593 = vset.pattern.permute.xlu0 13
        %594 = vperm.xlu0 %593, %v315
        %v595 = vpop.permute.xlu0 %594
        %v597 = vlaneseq
        %v598 = vshrl.u32 %v597, 7
        %v599 = vsub.s32 5, %v598
        %v600 = vrot.slane %v317, %v599
        %v601 = vadd.f32 %v595, %v600
        %v602 = vmul.f32 %v601, 1.442695
        %v603 = vpow.pop %v602
        %vm604 = vcmp.gt.f32.partialorder %v601, 0.0
        %s605 = sld [smem:[#allocation3 + $0xd]]
        %v606 = vstv %s605
        %v607 = vmul.f32 %v606, %v601
        %s608 = sld [smem:[#allocation6 + $0xd]]
        %v609 = vstv %s608
        %v610 = vadd.f32 %v607, %v609
        %v611 = vmul.f32 %v609, %v603
        %v612 = vsel %vm604, %v610, %v611
        %v613 = vadd.f32 %v592, %v612
        %614 = vset.pattern.permute.xlu0 14
        %615 = vperm.xlu0 %614, %v315
        %v616 = vpop.permute.xlu0 %615
        %v618 = vlaneseq
        %v619 = vshrl.u32 %v618, 7
        %v620 = vsub.s32 6, %v619
        %v621 = vrot.slane %v317, %v620
        %v622 = vadd.f32 %v616, %v621
        %v623 = vmul.f32 %v622, 1.442695
        %v624 = vpow.pop %v623
        %vm625 = vcmp.gt.f32.partialorder %v622, 0.0
        %s626 = sld [smem:[#allocation3 + $0xe]]
        %v627 = vstv %s626
        %v628 = vmul.f32 %v627, %v622
        %s629 = sld [smem:[#allocation6 + $0xe]]
        %v630 = vstv %s629
        %v631 = vadd.f32 %v628, %v630
        %v632 = vmul.f32 %v630, %v624
        %v633 = vsel %vm625, %v631, %v632
        %v634 = vadd.f32 %v613, %v633
        %635 = vset.pattern.permute.xlu0 15
        %636 = vperm.xlu0 %635, %v315
        %v637 = vpop.permute.xlu0 %636
        %v639 = vlaneseq
        %v640 = vshrl.u32 %v639, 7
        %v641 = vsub.s32 7, %v640
        %v642 = vrot.slane %v317, %v641
        %v643 = vadd.f32 %v637, %v642
        %v644 = vmul.f32 %v643, 1.442695
        %v645 = vpow.pop %v644
        %vm646 = vcmp.gt.f32.partialorder %v643, 0.0
        %s647 = sld [smem:[#allocation3 + $0xf]]
        %v648 = vstv %s647
        %v649 = vmul.f32 %v648, %v643
        %s650 = sld [smem:[#allocation6 + $0xf]]
        %v651 = vstv %s650
        %v652 = vadd.f32 %v649, %v651
        %v653 = vmul.f32 %v651, %v645
        %v654 = vsel %vm646, %v652, %v653
        %v655 = vadd.f32 %v634, %v654
        %vm656 = vcmask 64512
        %657 = vst.msk [vmem:[%s297] sm:$0xff] %vm656, %v655
        %s658 = sand.u32 %s172, 1
        %s659 = scalar_lea.sflag [#allocation4], %s658
        %s660 = sand.u32 %s172, 1
        %s661 = smul.addr %s660, 8
        %s662 = scalar_lea.vmem [#allocation8], %s661
        // Predicated region
        $region49: #{pointnet_pallas.1} parent=39 // pred_check
          %p663 = pneg %p182
        $region50: #{pointnet_pallas.1} parent=39 // pred_check_branch
          %665 = sbr.rel (%p663) target = $region52
        $region51: #{pointnet_pallas.1} parent=39 // pred_region
          %s667 = ssub.s32 128, 128
          %668 = vsyncadd %s659, %s667
          %s669 = sadd.s32 %s29, %s28
          %s670 = sadd.s32 %s669, %s27
          %s671 = smul.addr %s670, 128
          %s672 = scalar_lea.hbm %s5, %s671
          %s674 = sshll.u32 %s662, 4
          %s675 = int_to_ptr.vmem [resolvable:$true] %s674
          %677 = dma.vmem_to_hbm [thread:$0]  %s675, 128, %s672, %s659
        $region52: #{pointnet_pallas.1} parent=39 // pred_fallthru
          _
      $region40: #{pointnet_pallas.1} parent=5 // pred_fallthru
        _
      %p678 = scmp.le.s32.totalorder 2, %s17
      // Predicated region
      $region53: #{pointnet_pallas.1} parent=5 // pred_check
        %p679 = pneg %p678
      $region54: #{pointnet_pallas.1} parent=5 // pred_check_branch
        %681 = sbr.rel (%p679) target = $region56
      $region55: #{pointnet_pallas.1} parent=5 // pred_region
        %s682 = ssub.s32 %s17, 2
        // Predicated region
        $region57: #{pointnet_pallas.1} parent=55 // pred_check
          %p683 = pneg %p188
        $region58: #{pointnet_pallas.1} parent=55 // pred_check_branch
          %685 = sbr.rel (%p683) target = $region60
        $region59: #{pointnet_pallas.1} parent=55 // pred_region
          %s686 = sand.u32 %s173, 1
          %s687 = scalar_lea.sflag [#allocation4], %s686
          %s688 = sand.u32 %s173, 1
          %s689 = smul.addr %s688, 8
          %s690 = scalar_lea.vmem [#allocation8], %s689
          %691 = dma.done %s687, 128
        $region60: #{pointnet_pallas.1} parent=55 // pred_fallthru
          _
      $region56: #{pointnet_pallas.1} parent=5 // pred_fallthru
        _
    $region6: #{pointnet_pallas.1} parent=1 // loop_footer
      %s21 = sadd.s32 1, %s17
    $region7: #{pointnet_pallas.1} parent=1 // loop_footer_branch
      %16 = sbr.rel target = $region3
    $region8: #{pointnet_pallas.1} parent=1 // loop_exit
      _
    %692 = vsyncpa [#allocation4], 1
    %s693 = scalar_lea.sflag [#allocation4], 1
    %694 = vsyncpa %s693, 1
    %695 = vsyncpa [#allocation5], 1
    %s696 = scalar_lea.sflag [#allocation5], 1
    %697 = vsyncpa %s696, 1
    %698 = vsyncpa [#allocation7], 1

</llo_original>
